<compile_context>
chip_gen: v7x
topology: tpu7x:2x2x1
jax: 0.10.0
libtpu: 0.0.40
codegen_flags: <defaults>
</compile_context>

<pallas_src>
import jax
import jax.numpy as jnp
from jax.experimental import pallas as pl
from jax.experimental.pallas import tpu as pltpu


def _round_up(x, m):
    return ((x + m - 1) // m) * m


def _ffn_kernel(x_ref, w1_ref, b1_ref, w2_ref, b2_ref, o_ref):
    # fc1: [tm, Hp] @ [Hp, Ip] -> [tm, Ip]; bf16 (or f32) operands, f32 accumulate.
    h = jnp.dot(x_ref[...], w1_ref[...], preferred_element_type=jnp.float32)
    h = h + b1_ref[...]                      # b1 is (1, Ip), broadcasts over rows
    # Exact (erf-based) GELU, matching torch.nn.GELU() default.
    h = 0.5 * h * (1.0 + jax.lax.erf(h * jnp.float32(0.7071067811865476)))
    # dropout == identity (eval mode)
    # fc2: [tm, Ip] @ [Ip, Hp] -> [tm, Hp]
    y = jnp.dot(h.astype(w2_ref.dtype), w2_ref[...],
                preferred_element_type=jnp.float32)
    y = y + b2_ref[...]                      # b2 is (1, Hp)
    o_ref[...] = y.astype(o_ref.dtype)


def zephyra_feedforward(hidden_states, w1, b1, w2, b2, *, tm=256,
                        use_bf16_mxu=True):
    """hidden_states: [B, S, H]; w1: [H, I]; b1: [I]; w2: [I, H]; b2: [H].

    w1/w2 are the (in, out) transpose of torch nn.Linear's (out, in) .weight.
    """
    B, S, H = hidden_states.shape
    I = w1.shape[1]
    M = B * S
    out_dtype = hidden_states.dtype

    # Lane-dense padding: every last dim presented to the MXU / stores is a
    # multiple of 128. Zero padding is exact (padded columns stay zero).
    Hp = _round_up(H, 128)
    Ip = _round_up(I, 128)

    # Row tile: large (128-multiple) to keep the MXU busy and amortize per-step
    # overhead, but no larger than the (128-aligned) problem needs.
    tm = _round_up(min(tm, _round_up(M, 128)), 8)
    Mp = _round_up(M, tm)

    x2d = hidden_states.reshape(M, H)
    x_p = jnp.pad(x2d, ((0, Mp - M), (0, Hp - H)))
    w1_p = jnp.pad(w1, ((0, Hp - H), (0, Ip - I)))
    w2_p = jnp.pad(w2, ((0, Ip - I), (0, Hp - H)))
    b1_p = jnp.pad(b1, (0, Ip - I)).reshape(1, Ip).astype(jnp.float32)
    b2_p = jnp.pad(b2, (0, Hp - H)).reshape(1, Hp).astype(jnp.float32)

    if use_bf16_mxu:
        # bf16 operands + f32 accumulation => full-rate MXU. Small (~bf16 eps)
        # deviation from the pure-f32 torch reference — accepted tradeoff.
        x_p = x_p.astype(jnp.bfloat16)
        w1_p = w1_p.astype(jnp.bfloat16)
        w2_p = w2_p.astype(jnp.bfloat16)

    grid = (Mp // tm,)

    # Advisory cost hint so XLA schedules the custom call sensibly.
    cost = pl.CostEstimate(
        flops=4 * M * H * I,
        transcendentals=M * I,
        bytes_accessed=(x_p.size * x_p.dtype.itemsize
                        + w1_p.size * w1_p.dtype.itemsize
                        + w2_p.size * w2_p.dtype.itemsize
                        + b1_p.size * 4 + b2_p.size * 4
                        + Mp * Hp * jnp.dtype(out_dtype).itemsize),
    )

    # Explicit VMEM budget: double-buffered x/out tiles, (default) double-
    # buffered resident weights, biases, f32 intermediate, plus headroom.
    vmem_need = (
        2 * tm * Hp * x_p.dtype.itemsize                      # x tiles
        + 2 * tm * Hp * jnp.dtype(out_dtype).itemsize         # out tiles
        + 2 * (Hp * Ip + Ip * Hp) * w1_p.dtype.itemsize       # W1/W2 buffers
        + 2 * (Ip + Hp) * 4                                   # biases
        + tm * Ip * 4                                         # f32 intermediate
    )
    vmem_limit = min(_round_up(vmem_need + (8 << 20), 1 << 20), 96 << 20)

    out2d = pl.pallas_call(
        _ffn_kernel,
        out_shape=jax.ShapeDtypeStruct((Mp, Hp), out_dtype),
        grid_spec=pltpu.PrefetchScalarGridSpec(
            num_scalar_prefetch=0,
            grid=grid,
            in_specs=[
                pl.BlockSpec((tm, Hp), lambda i: (i, 0)),   # x row tile
                pl.BlockSpec((Hp, Ip), lambda i: (0, 0)),   # W1 (resident)
                pl.BlockSpec((1, Ip), lambda i: (0, 0)),    # b1
                pl.BlockSpec((Ip, Hp), lambda i: (0, 0)),   # W2 (resident)
                pl.BlockSpec((1, Hp), lambda i: (0, 0)),    # b2
            ],
            out_specs=pl.BlockSpec((tm, Hp), lambda i: (i, 0)),
        ),
        compiler_params=pltpu.CompilerParams(
            dimension_semantics=("parallel",),
            vmem_limit_bytes=vmem_limit,
        ),
        cost_estimate=cost,
    )(x_p, w1_p, b1_p, w2_p, b2_p)

    return out2d[:M, :H].reshape(B, S, H)


if __name__ == "__main__":
    # Synthetic config: HIDDEN_SIZE=32, INTERMEDIATE_SIZE=64, HIDDEN_ACT='gelu'
    B, S, H, I = 2, 8, 32, 64

    key = jax.random.PRNGKey(0)
    kx, kw1, kb1, kw2, kb2 = jax.random.split(key, 5)

    x = jax.random.normal(kx, (B, S, H), dtype=jnp.float32)
    # PyTorch Linear stores weight as (out, in); we keep the (in, out) transpose.
    w1 = jax.random.normal(kw1, (H, I), dtype=jnp.float32) * 0.02
    b1 = jax.random.normal(kb1, (I,), dtype=jnp.float32) * 0.02
    w2 = jax.random.normal(kw2, (I, H), dtype=jnp.float32) * 0.02
    b2 = jax.random.normal(kb2, (H,), dtype=jnp.float32) * 0.02

    out = zephyra_feedforward(x, w1, b1, w2, b2)          # bf16 MXU feed
    jax.block_until_ready(out)

    # Plain-JAX f32 reference of the same forward pass.
    h_ref = x.reshape(-1, H) @ w1 + b1
    h_ref = 0.5 * h_ref * (1.0 + jax.lax.erf(h_ref / jnp.sqrt(2.0)))
    ref = (h_ref @ w2 + b2).reshape(B, S, H)

    # bf16-feed path: bf16-epsilon-level tolerance.
    assert jnp.allclose(out, ref, atol=5e-3, rtol=5e-2), "bf16-path mismatch"

    # Exact f32 path for a tight correctness check.
    out_f32 = zephyra_feedforward(x, w1, b1, w2, b2, use_bf16_mxu=False)
    jax.block_until_ready(out_f32)
    assert jnp.allclose(out_f32, ref, atol=1e-5, rtol=1e-5), "f32-path mismatch"

    print("KERNEL_OK")
</pallas_src>

<mosaic_0001>
module attributes {stable_mosaic.version = 11 : i64} {
  func.func @_ffn_kernel(%arg0: i32, %arg1: memref<128x128xbf16, #tpu.memory_space<vmem>>, %arg2: memref<128x128xbf16, #tpu.memory_space<vmem>>, %arg3: memref<1x128xf32, #tpu.memory_space<vmem>>, %arg4: memref<128x128xbf16, #tpu.memory_space<vmem>>, %arg5: memref<1x128xf32, #tpu.memory_space<vmem>>, %arg6: memref<128x128xf32, #tpu.memory_space<vmem>>) attributes {dimension_semantics = [#tpu.dimension_semantics<parallel>], iteration_bounds = array<i64: 1>, scalar_prefetch = 0 : i64, scratch_operands = 0 : i64, tpu.core_type = #tpu.core_type<tc>, window_params = [{transform_indices = @transform_0, window_bounds = array<i64: 128, 128>}, {pipeline_mode = #tpu.pipeline_mode<synchronous>, transform_indices = @transform_1, window_bounds = array<i64: 128, 128>}, {pipeline_mode = #tpu.pipeline_mode<synchronous>, transform_indices = @transform_2, window_bounds = array<i64: 1, 128>}, {pipeline_mode = #tpu.pipeline_mode<synchronous>, transform_indices = @transform_3, window_bounds = array<i64: 128, 128>}, {pipeline_mode = #tpu.pipeline_mode<synchronous>, transform_indices = @transform_4, window_bounds = array<i64: 1, 128>}, {transform_indices = @transform_5, window_bounds = array<i64: 128, 128>}]} {
    %c0 = arith.constant 0 : index
    %c0_0 = arith.constant 0 : index
    %0 = vector.load %arg1[%c0, %c0_0] : memref<128x128xbf16, #tpu.memory_space<vmem>>, vector<128x128xbf16>
    %c0_1 = arith.constant 0 : index
    %c0_2 = arith.constant 0 : index
    %1 = vector.load %arg2[%c0_1, %c0_2] : memref<128x128xbf16, #tpu.memory_space<vmem>>, vector<128x128xbf16>
    %cst = arith.constant dense<0.000000e+00> : vector<128x128xf32>
    %2 = tpu.matmul %0, %1, %cst {dimension_numbers = #tpu.dot_dimension_numbers<[1], [0], [0], [1], [0, 0, 1, 1], [], []>} : vector<128x128xbf16>, vector<128x128xbf16>, vector<128x128xf32> -> vector<128x128xf32>
    %c0_3 = arith.constant 0 : index
    %c0_4 = arith.constant 0 : index
    %3 = vector.load %arg3[%c0_3, %c0_4] : memref<1x128xf32, #tpu.memory_space<vmem>>, vector<1x128xf32>
    %4 = vector.broadcast %3 : vector<1x128xf32> to vector<128x128xf32>
    %5 = arith.addf %2, %4 : vector<128x128xf32>
    %cst_5 = arith.constant 5.000000e-01 : f32
    %6 = vector.broadcast %cst_5 : f32 to vector<128x128xf32>
    %7 = arith.mulf %6, %5 : vector<128x128xf32>
    %cst_6 = arith.constant 0.707106769 : f32
    %8 = vector.broadcast %cst_6 : f32 to vector<128x128xf32>
    %9 = arith.mulf %5, %8 : vector<128x128xf32>
    %10 = math.erf %9 : vector<128x128xf32>
    %cst_7 = arith.constant 1.000000e+00 : f32
    %11 = vector.broadcast %cst_7 : f32 to vector<128x128xf32>
    %12 = arith.addf %11, %10 : vector<128x128xf32>
    %13 = arith.mulf %7, %12 : vector<128x128xf32>
    %14 = arith.truncf %13 : vector<128x128xf32> to vector<128x128xbf16>
    %c0_8 = arith.constant 0 : index
    %c0_9 = arith.constant 0 : index
    %15 = vector.load %arg4[%c0_8, %c0_9] : memref<128x128xbf16, #tpu.memory_space<vmem>>, vector<128x128xbf16>
    %cst_10 = arith.constant dense<0.000000e+00> : vector<128x128xf32>
    %16 = tpu.matmul %14, %15, %cst_10 {dimension_numbers = #tpu.dot_dimension_numbers<[1], [0], [0], [1], [0, 0, 1, 1], [], []>} : vector<128x128xbf16>, vector<128x128xbf16>, vector<128x128xf32> -> vector<128x128xf32>
    %c0_11 = arith.constant 0 : index
    %c0_12 = arith.constant 0 : index
    %17 = vector.load %arg5[%c0_11, %c0_12] : memref<1x128xf32, #tpu.memory_space<vmem>>, vector<1x128xf32>
    %18 = vector.broadcast %17 : vector<1x128xf32> to vector<128x128xf32>
    %19 = arith.addf %16, %18 : vector<128x128xf32>
    %c0_13 = arith.constant 0 : index
    %c0_14 = arith.constant 0 : index
    %20 = vector.load %arg6[%c0_13, %c0_14] : memref<128x128xf32, #tpu.memory_space<vmem>>, vector<128x128xf32>
    tpu.vector_store %arg6[%c0_13, %c0_14], %19 {strides = array<i32>} : memref<128x128xf32, #tpu.memory_space<vmem>>, vector<128x128xf32>,
    return
  }
  func.func @transform_0(%arg0: i32) -> (i32, i32) {
    %c0_i32 = arith.constant 0 : i32
    %c0_i32_0 = arith.constant 0 : i32
    return %arg0, %c0_i32 : i32, i32
  }
  func.func @transform_1(%arg0: i32) -> (i32, i32) {
    %c0_i32 = arith.constant 0 : i32
    %c0_i32_0 = arith.constant 0 : i32
    %c0_i32_1 = arith.constant 0 : i32
    return %c0_i32, %c0_i32_0 : i32, i32
  }
  func.func @transform_2(%arg0: i32) -> (i32, i32) {
    %c0_i32 = arith.constant 0 : i32
    %c0_i32_0 = arith.constant 0 : i32
    %c0_i32_1 = arith.constant 0 : i32
    return %c0_i32, %c0_i32_0 : i32, i32
  }
  func.func @transform_3(%arg0: i32) -> (i32, i32) {
    %c0_i32 = arith.constant 0 : i32
    %c0_i32_0 = arith.constant 0 : i32
    %c0_i32_1 = arith.constant 0 : i32
    return %c0_i32, %c0_i32_0 : i32, i32
  }
  func.func @transform_4(%arg0: i32) -> (i32, i32) {
    %c0_i32 = arith.constant 0 : i32
    %c0_i32_0 = arith.constant 0 : i32
    %c0_i32_1 = arith.constant 0 : i32
    return %c0_i32, %c0_i32_0 : i32, i32
  }
  func.func @transform_5(%arg0: i32) -> (i32, i32) {
    %c0_i32 = arith.constant 0 : i32
    %c0_i32_0 = arith.constant 0 : i32
    return %arg0, %c0_i32 : i32, i32
  }
}

</mosaic_0001>

<llo_original>
// kernel: tpu_custom_call.1
$region0: #{tpu_custom_call.1}
  #allocation0 [shape = 'u32[]', space=smem, size = 0x4, offset = 0x4, fixed_abs, tag = 'smem constant byte address 0x4 - core index']
  #allocation1 [shape = 'u32[144,128]{1,0:T(1,128)}', space=vmem, size = 0x12000, scoped, tag = 'internal scratch']
  %s0 = inlined_call_operand.hbm [shape: bf16[128,128], index: 0, kind: input, shape index: {}]
  %s1 = inlined_call_operand.hbm [shape: bf16[128,128], index: 1, kind: input, shape index: {}]
  %s2 = inlined_call_operand.vmem [shape: f32[1,128], index: 2, kind: input, shape index: {}]
  %s3 = inlined_call_operand.hbm [shape: bf16[128,128], index: 3, kind: input, shape index: {}]
  %s4 = inlined_call_operand.vmem [shape: f32[1,128], index: 4, kind: input, shape index: {}]
  %s5 = inlined_call_operand.hbm [shape: f32[128,128], index: 5, kind: output, shape index: {}]
  %s6 = sld [smem:[#allocation0]]
  $region42: #{tpu_custom_call.1} parent=0
    _
  %s8 = ssub.s32 1, %s6
  %s9 = scalar_select 0, %s8, %s6
  $region1: #{tpu_custom_call.1} parent=0
    #allocation2 [shape = 'u8[32768]{0}', space=vmem, size = 0x8000, scoped, tag = 'input window, operand 0, single buffered']
    #allocation3 [shape = 's32[1]{0}', space=sflag, size = 0x4, scoped, tag = 'scoped memory for tpu_custom_call.1']
    #allocation4 [shape = 's32[1]{0}', space=sflag, size = 0x4, scoped, tag = 'scoped memory for tpu_custom_call.1']
    #allocation5 [shape = 'u8[32768]{0}', space=vmem, size = 0x8000, scoped, tag = 'input window, operand 1, single buffered']
    #allocation6 [shape = 's32[1]{0}', space=sflag, size = 0x4, scoped, tag = 'scoped memory for tpu_custom_call.1']
    #allocation7 [shape = 'u8[32768]{0}', space=vmem, size = 0x8000, scoped, tag = 'input window, operand 3, single buffered']
    #allocation8 [shape = 'u8[65536]{0}', space=vmem, size = 0x10000, scoped, tag = 'output window, operand 0, single buffered']
    %10 = vsyncpa [#allocation3], 0
    %11 = vsyncpa [#allocation6], 0
    %12 = vsyncpa [#allocation4], 0
    // Predicated region
    $region2: #{tpu_custom_call.1} parent=1 // pred_check
      _
    $region3: #{tpu_custom_call.1} parent=1 // pred_check_branch
      %14 = sbr.rel (0) target = $region5
    $region4: #{tpu_custom_call.1} parent=1 // pred_region
      %s16 = ssub.s32 1024, 1024
      %17 = vsyncadd [#allocation3], %s16
      %s18 = sshll.u32 [#allocation2], 4
      %s19 = int_to_ptr.vmem [resolvable:$true] %s18
      %24 = dma.hbm_to_vmem [thread:$0]  %s0, 1024, %s19, [#allocation3], 64, 64, 4
    $region5: #{tpu_custom_call.1} parent=1 // pred_fallthru
      _
    // Predicated region
    $region6: #{tpu_custom_call.1} parent=1 // pred_check
      _
    $region7: #{tpu_custom_call.1} parent=1 // pred_check_branch
      %26 = sbr.rel (0) target = $region9
    $region8: #{tpu_custom_call.1} parent=1 // pred_region
      %s28 = ssub.s32 1024, 1024
      %29 = vsyncadd [#allocation6], %s28
      %s30 = sshll.u32 [#allocation5], 4
      %s31 = int_to_ptr.vmem [resolvable:$true] %s30
      %36 = dma.hbm_to_vmem [thread:$0]  %s1, 1024, %s31, [#allocation6], 64, 64, 4
    $region9: #{tpu_custom_call.1} parent=1 // pred_fallthru
      _
    // Predicated region
    $region10: #{tpu_custom_call.1} parent=1 // pred_check
      _
    $region11: #{tpu_custom_call.1} parent=1 // pred_check_branch
      %38 = sbr.rel (0) target = $region13
    $region12: #{tpu_custom_call.1} parent=1 // pred_region
      _
    $region13: #{tpu_custom_call.1} parent=1 // pred_fallthru
      _
    // Predicated region
    $region14: #{tpu_custom_call.1} parent=1 // pred_check
      _
    $region15: #{tpu_custom_call.1} parent=1 // pred_check_branch
      %40 = sbr.rel (0) target = $region17
    $region16: #{tpu_custom_call.1} parent=1 // pred_region
      %s42 = ssub.s32 1024, 1024
      %43 = vsyncadd [#allocation6], %s42
      %s44 = sshll.u32 [#allocation7], 4
      %s45 = int_to_ptr.vmem [resolvable:$true] %s44
      %50 = dma.hbm_to_vmem [thread:$0]  %s3, 1024, %s45, [#allocation6], 64, 64, 4
    $region17: #{tpu_custom_call.1} parent=1 // pred_fallthru
      _
    // Predicated region
    $region18: #{tpu_custom_call.1} parent=1 // pred_check
      _
    $region19: #{tpu_custom_call.1} parent=1 // pred_check_branch
      %52 = sbr.rel (0) target = $region21
    $region20: #{tpu_custom_call.1} parent=1 // pred_region
      _
    $region21: #{tpu_custom_call.1} parent=1 // pred_fallthru
      _
    // Predicated region
    $region22: #{tpu_custom_call.1} parent=1 // pred_check
      _
    $region23: #{tpu_custom_call.1} parent=1 // pred_check_branch
      %54 = sbr.rel (0) target = $region25
    $region24: #{tpu_custom_call.1} parent=1 // pred_region
      %55 = dma.done [#allocation3], 1024
    $region25: #{tpu_custom_call.1} parent=1 // pred_fallthru
      _
    // Predicated region
    $region26: #{tpu_custom_call.1} parent=1 // pred_check
      _
    $region27: #{tpu_custom_call.1} parent=1 // pred_check_branch
      %57 = sbr.rel (0) target = $region29
    $region28: #{tpu_custom_call.1} parent=1 // pred_region
      %58 = dma.done [#allocation6], 1024
    $region29: #{tpu_custom_call.1} parent=1 // pred_fallthru
      _
    // Predicated region
    $region30: #{tpu_custom_call.1} parent=1 // pred_check
      _
    $region31: #{tpu_custom_call.1} parent=1 // pred_check_branch
      %60 = sbr.rel (0) target = $region33
    $region32: #{tpu_custom_call.1} parent=1 // pred_region
      %61 = dma.done [#allocation6], 1024
    $region33: #{tpu_custom_call.1} parent=1 // pred_fallthru
      _
    %v63 = vld [vmem:[#allocation2] sm:$0xf]
    %v64 = vld [vmem:[#allocation2 + $0x4] sm:$0xf]
    %v65 = vld [vmem:[#allocation2 + $0x8] sm:$0xf]
    %v66 = vld [vmem:[#allocation2 + $0xc] sm:$0xf]
    %v67 = vld [vmem:[#allocation2 + $0x10] sm:$0xf]
    %v68 = vld [vmem:[#allocation2 + $0x14] sm:$0xf]
    %v69 = vld [vmem:[#allocation2 + $0x18] sm:$0xf]
    %v70 = vld [vmem:[#allocation2 + $0x1c] sm:$0xf]
    %v71 = vld [vmem:[#allocation2 + $0x20] sm:$0xf]
    %v72 = vld [vmem:[#allocation2 + $0x24] sm:$0xf]
    %v73 = vld [vmem:[#allocation2 + $0x28] sm:$0xf]
    %v74 = vld [vmem:[#allocation2 + $0x2c] sm:$0xf]
    %v75 = vld [vmem:[#allocation2 + $0x30] sm:$0xf]
    %v76 = vld [vmem:[#allocation2 + $0x34] sm:$0xf]
    %v77 = vld [vmem:[#allocation2 + $0x38] sm:$0xf]
    %v78 = vld [vmem:[#allocation2 + $0x3c] sm:$0xf]
    %v79 = vld [vmem:[#allocation5] sm:$0xf]
    %v80 = vld [vmem:[#allocation5 + $0x4] sm:$0xf]
    %v81 = vld [vmem:[#allocation5 + $0x8] sm:$0xf]
    %v82 = vld [vmem:[#allocation5 + $0xc] sm:$0xf]
    %v83 = vld [vmem:[#allocation5 + $0x10] sm:$0xf]
    %v84 = vld [vmem:[#allocation5 + $0x14] sm:$0xf]
    %v85 = vld [vmem:[#allocation5 + $0x18] sm:$0xf]
    %v86 = vld [vmem:[#allocation5 + $0x1c] sm:$0xf]
    %v87 = vld [vmem:[#allocation5 + $0x20] sm:$0xf]
    %v88 = vld [vmem:[#allocation5 + $0x24] sm:$0xf]
    %v89 = vld [vmem:[#allocation5 + $0x28] sm:$0xf]
    %v90 = vld [vmem:[#allocation5 + $0x2c] sm:$0xf]
    %v91 = vld [vmem:[#allocation5 + $0x30] sm:$0xf]
    %v92 = vld [vmem:[#allocation5 + $0x34] sm:$0xf]
    %v93 = vld [vmem:[#allocation5 + $0x38] sm:$0xf]
    %v94 = vld [vmem:[#allocation5 + $0x3c] sm:$0xf]
    %v95 = vld [vmem:[%s2] sm:$0x1]
    %v97 = vlaneseq
    %v98 = vshrl.u32 %v97, 7
    %v99 = vsub.s32 0, %v98
    %v100 = vrot.slane %v95, %v99
    %v118 = vunpack.c.l.b16 %v63
    %v119 = vunpack.c.l.b16 %v64
    %v120 = vunpack.c.l.b16 %v65
    %v121 = vunpack.c.l.b16 %v66
    %v122 = vunpack.c.l.b16 %v67
    %v123 = vunpack.c.l.b16 %v68
    %v124 = vunpack.c.l.b16 %v69
    %v125 = vunpack.c.l.b16 %v70
    %v126 = vunpack.c.l.b16 %v71
    %v127 = vunpack.c.l.b16 %v72
    %v128 = vunpack.c.l.b16 %v73
    %v129 = vunpack.c.l.b16 %v74
    %v130 = vunpack.c.l.b16 %v75
    %v131 = vunpack.c.l.b16 %v76
    %v132 = vunpack.c.l.b16 %v77
    %v133 = vunpack.c.l.b16 %v78
    %v134 = vpack.c.b16 %v119, %v118
    %v135 = vpack.c.b16 %v121, %v120
    %v136 = vpack.c.b16 %v123, %v122
    %v137 = vpack.c.b16 %v125, %v124
    %v138 = vpack.c.b16 %v127, %v126
    %v139 = vpack.c.b16 %v129, %v128
    %v140 = vpack.c.b16 %v131, %v130
    %v141 = vpack.c.b16 %v133, %v132
    %v166 = vunpack.c.l.b16 %v79
    %v167 = vunpack.c.l.b16 %v80
    %v168 = vunpack.c.l.b16 %v81
    %v169 = vunpack.c.l.b16 %v82
    %v170 = vunpack.c.l.b16 %v83
    %v171 = vunpack.c.l.b16 %v84
    %v172 = vunpack.c.l.b16 %v85
    %v173 = vunpack.c.l.b16 %v86
    %v174 = vunpack.c.l.b16 %v87
    %v175 = vunpack.c.l.b16 %v88
    %v176 = vunpack.c.l.b16 %v89
    %v177 = vunpack.c.l.b16 %v90
    %v178 = vunpack.c.l.b16 %v91
    %v179 = vunpack.c.l.b16 %v92
    %v180 = vunpack.c.l.b16 %v93
    %v181 = vunpack.c.l.b16 %v94
    %v182 = vpack.c.b16 %v167, %v166
    %v183 = vpack.c.b16 %v169, %v168
    %v184 = vpack.c.b16 %v171, %v170
    %v185 = vpack.c.b16 %v173, %v172
    %v186 = vpack.c.b16 %v175, %v174
    %v187 = vpack.c.b16 %v177, %v176
    %v188 = vpack.c.b16 %v179, %v178
    %v189 = vpack.c.b16 %v181, %v180
    %198 = vmatprep.subr.bf16.mxu0 0
    %199 = vmatpush1.bf16.msra.mxu0 %v182
    %200 = vmatprep.subr.bf16.mxu0 0
    %201 = vmatpush1.bf16.msra.mxu0 %v183
    %202 = vmatprep.subr.bf16.mxu0 0
    %203 = vmatpush1.bf16.msra.mxu0 %v184
    %204 = vmatprep.subr.bf16.mxu0 0
    %205 = vmatpush1.bf16.msra.mxu0 %v185
    %206 = vmatprep.subr.bf16.mxu0 0
    %207 = vmatpush1.bf16.msra.mxu0 %v186
    %208 = vmatprep.subr.bf16.mxu0 0
    %209 = vmatpush1.bf16.msra.mxu0 %v187
    %210 = vmatprep.subr.bf16.mxu0 0
    %211 = vmatpush1.bf16.msra.mxu0 %v188
    %212 = vmatprep.subr.bf16.mxu0 0
    %213 = vmatpush1.bf16.msra.mxu0 %v189
    %214 = vmatprep.subr.bf16.mxu0 0
    %215 = vmatpush1.bf16.msra.mxu0 0
    %216 = vmatprep.subr.bf16.mxu0 0
    %217 = vmatpush1.bf16.msra.mxu0 0
    %218 = vmatprep.subr.bf16.mxu0 0
    %219 = vmatpush1.bf16.msra.mxu0 0
    %220 = vmatprep.subr.bf16.mxu0 0
    %221 = vmatpush1.bf16.msra.mxu0 0
    %222 = vmatprep.subr.bf16.mxu0 0
    %223 = vmatpush1.bf16.msra.mxu0 0
    %224 = vmatprep.subr.bf16.mxu0 0
    %225 = vmatpush1.bf16.msra.mxu0 0
    %226 = vmatprep.subr.bf16.mxu0 0
    %227 = vmatpush1.bf16.msra.mxu0 0
    %228 = vmatprep.subr.bf16.mxu0 0
    %229 = vmatpush1.bf16.msra.mxu0 0
    %230 = vmatprep.mubr.bf16.mxu0 0
    %231 = vmatmul.mubr.bf16.gmra.mrb[0].mxu0 %v134
    %v232 = vpop.f32.mrb[0].mxu0
    %v233 = vadd.f32 %v100, %v232
    %v234 = vpop.f32.mrb[0].mxu0
    %v235 = vpop.f32.mrb[0].mxu0
    %v236 = vadd.f32 %v100, %v235
    %v237 = vpop.f32.mrb[0].mxu0
    %238 = vmatprep.mubr.bf16.mxu0 0
    %239 = vmatmul.mubr.bf16.gmra.mrb[0].mxu0 %v135
    %v240 = vpop.f32.mrb[0].mxu0
    %v241 = vadd.f32 %v100, %v240
    %v242 = vpop.f32.mrb[0].mxu0
    %v243 = vpop.f32.mrb[0].mxu0
    %v244 = vadd.f32 %v100, %v243
    %v245 = vpop.f32.mrb[0].mxu0
    %246 = vmatprep.mubr.bf16.mxu0 0
    %247 = vmatmul.mubr.bf16.gmra.mrb[0].mxu0 %v136
    %v248 = vpop.f32.mrb[0].mxu0
    %v249 = vadd.f32 %v100, %v248
    %v250 = vpop.f32.mrb[0].mxu0
    %v251 = vpop.f32.mrb[0].mxu0
    %v252 = vadd.f32 %v100, %v251
    %v253 = vpop.f32.mrb[0].mxu0
    %254 = vmatprep.mubr.bf16.mxu0 0
    %255 = vmatmul.mubr.bf16.gmra.mrb[0].mxu0 %v137
    %v256 = vpop.f32.mrb[0].mxu0
    %v257 = vadd.f32 %v100, %v256
    %v258 = vpop.f32.mrb[0].mxu0
    %v259 = vpop.f32.mrb[0].mxu0
    %v260 = vadd.f32 %v100, %v259
    %v261 = vpop.f32.mrb[0].mxu0
    %262 = vmatprep.mubr.bf16.mxu0 0
    %263 = vmatmul.mubr.bf16.gmra.mrb[0].mxu0 %v138
    %v264 = vpop.f32.mrb[0].mxu0
    %v265 = vadd.f32 %v100, %v264
    %v266 = vpop.f32.mrb[0].mxu0
    %v267 = vpop.f32.mrb[0].mxu0
    %v268 = vadd.f32 %v100, %v267
    %v269 = vpop.f32.mrb[0].mxu0
    %270 = vmatprep.mubr.bf16.mxu0 0
    %271 = vmatmul.mubr.bf16.gmra.mrb[0].mxu0 %v139
    %v272 = vpop.f32.mrb[0].mxu0
    %v273 = vadd.f32 %v100, %v272
    %v274 = vpop.f32.mrb[0].mxu0
    %v275 = vpop.f32.mrb[0].mxu0
    %v276 = vadd.f32 %v100, %v275
    %v277 = vpop.f32.mrb[0].mxu0
    %278 = vmatprep.mubr.bf16.mxu0 0
    %279 = vmatmul.mubr.bf16.gmra.mrb[0].mxu0 %v140
    %v280 = vpop.f32.mrb[0].mxu0
    %v281 = vadd.f32 %v100, %v280
    %v282 = vpop.f32.mrb[0].mxu0
    %v283 = vpop.f32.mrb[0].mxu0
    %v284 = vadd.f32 %v100, %v283
    %v285 = vpop.f32.mrb[0].mxu0
    %286 = vmatprep.mubr.bf16.mxu0 0
    %287 = vmatmul.mubr.bf16.gmra.mrb[0].mxu0 %v141
    %v288 = vpop.f32.mrb[0].mxu0
    %v289 = vadd.f32 %v100, %v288
    %v290 = vpop.f32.mrb[0].mxu0
    %v291 = vpop.f32.mrb[0].mxu0
    %v292 = vadd.f32 %v100, %v291
    %v293 = vpop.f32.mrb[0].mxu0
    %294 = vdwg.mxu0
    %v295 = vmul.f32 %v233, 0.5
    %v296 = vmul.f32 %v236, 0.5
    %v297 = vmul.f32 %v241, 0.5
    %v298 = vmul.f32 %v244, 0.5
    %v299 = vmul.f32 %v249, 0.5
    %v300 = vmul.f32 %v252, 0.5
    %v301 = vmul.f32 %v257, 0.5
    %v302 = vmul.f32 %v260, 0.5
    %v303 = vmul.f32 %v265, 0.5
    %v304 = vmul.f32 %v268, 0.5
    %v305 = vmul.f32 %v273, 0.5
    %v306 = vmul.f32 %v276, 0.5
    %v307 = vmul.f32 %v281, 0.5
    %v308 = vmul.f32 %v284, 0.5
    %v309 = vmul.f32 %v289, 0.5
    %v310 = vmul.f32 %v292, 0.5
    %v311 = vmul.f32 %v233, 0.70710677
    %v312 = vmul.f32 %v236, 0.70710677
    %v313 = vmul.f32 %v241, 0.70710677
    %v314 = vmul.f32 %v244, 0.70710677
    %v315 = vmul.f32 %v249, 0.70710677
    %v316 = vmul.f32 %v252, 0.70710677
    %v317 = vmul.f32 %v257, 0.70710677
    %v318 = vmul.f32 %v260, 0.70710677
    %v319 = vmul.f32 %v265, 0.70710677
    %v320 = vmul.f32 %v268, 0.70710677
    %v321 = vmul.f32 %v273, 0.70710677
    %v322 = vmul.f32 %v276, 0.70710677
    %v323 = vmul.f32 %v281, 0.70710677
    %v324 = vmul.f32 %v284, 0.70710677
    %v325 = vmul.f32 %v289, 0.70710677
    %v326 = vmul.f32 %v292, 0.70710677
    %v327 = verf.f32.pop %v311
    %v328 = verf.f32.pop %v312
    %v329 = verf.f32.pop %v313
    %v330 = verf.f32.pop %v314
    %v331 = verf.f32.pop %v315
    %v332 = verf.f32.pop %v316
    %v333 = verf.f32.pop %v317
    %v334 = verf.f32.pop %v318
    %v335 = verf.f32.pop %v319
    %v336 = verf.f32.pop %v320
    %v337 = verf.f32.pop %v321
    %v338 = verf.f32.pop %v322
    %v339 = verf.f32.pop %v323
    %v340 = verf.f32.pop %v324
    %v341 = verf.f32.pop %v325
    %v342 = verf.f32.pop %v326
    %v343 = vadd.f32 %v327, 1.0
    %v344 = vadd.f32 %v328, 1.0
    %v345 = vadd.f32 %v329, 1.0
    %v346 = vadd.f32 %v330, 1.0
    %v347 = vadd.f32 %v331, 1.0
    %v348 = vadd.f32 %v332, 1.0
    %v349 = vadd.f32 %v333, 1.0
    %v350 = vadd.f32 %v334, 1.0
    %v351 = vadd.f32 %v335, 1.0
    %v352 = vadd.f32 %v336, 1.0
    %v353 = vadd.f32 %v337, 1.0
    %v354 = vadd.f32 %v338, 1.0
    %v355 = vadd.f32 %v339, 1.0
    %v356 = vadd.f32 %v340, 1.0
    %v357 = vadd.f32 %v341, 1.0
    %v358 = vadd.f32 %v342, 1.0
    %v359 = vmul.f32 %v295, %v343
    %v360 = vmul.f32 %v296, %v344
    %v361 = vmul.f32 %v297, %v345
    %v362 = vmul.f32 %v298, %v346
    %v363 = vmul.f32 %v299, %v347
    %v364 = vmul.f32 %v300, %v348
    %v365 = vmul.f32 %v301, %v349
    %v366 = vmul.f32 %v302, %v350
    %v367 = vmul.f32 %v303, %v351
    %v368 = vmul.f32 %v304, %v352
    %v369 = vmul.f32 %v305, %v353
    %v370 = vmul.f32 %v306, %v354
    %v371 = vmul.f32 %v307, %v355
    %v372 = vmul.f32 %v308, %v356
    %v373 = vmul.f32 %v309, %v357
    %v374 = vmul.f32 %v310, %v358
    %v375 = vpack.c.bf16 %v360, %v359
    %v376 = vpack.c.bf16 %v362, %v361
    %v377 = vpack.c.bf16 %v364, %v363
    %v378 = vpack.c.bf16 %v366, %v365
    %v379 = vpack.c.bf16 %v368, %v367
    %v380 = vpack.c.bf16 %v370, %v369
    %v381 = vpack.c.bf16 %v372, %v371
    %v382 = vpack.c.bf16 %v374, %v373
    %v383 = vld [vmem:[#allocation7] sm:$0xf]
    %v384 = vld [vmem:[#allocation7 + $0x4] sm:$0xf]
    %v385 = vld [vmem:[#allocation7 + $0x8] sm:$0xf]
    %v386 = vld [vmem:[#allocation7 + $0xc] sm:$0xf]
    %v387 = vld [vmem:[#allocation7 + $0x10] sm:$0xf]
    %v388 = vld [vmem:[#allocation7 + $0x14] sm:$0xf]
    %v389 = vld [vmem:[#allocation7 + $0x18] sm:$0xf]
    %v390 = vld [vmem:[#allocation7 + $0x1c] sm:$0xf]
    %v391 = vld [vmem:[#allocation7 + $0x20] sm:$0xf]
    %v392 = vld [vmem:[#allocation7 + $0x24] sm:$0xf]
    %v393 = vld [vmem:[#allocation7 + $0x28] sm:$0xf]
    %v394 = vld [vmem:[#allocation7 + $0x2c] sm:$0xf]
    %v395 = vld [vmem:[#allocation7 + $0x30] sm:$0xf]
    %v396 = vld [vmem:[#allocation7 + $0x34] sm:$0xf]
    %v397 = vld [vmem:[#allocation7 + $0x38] sm:$0xf]
    %v398 = vld [vmem:[#allocation7 + $0x3c] sm:$0xf]
    %v399 = vld [vmem:[%s4] sm:$0x1]
    %v401 = vlaneseq
    %v402 = vshrl.u32 %v401, 7
    %v403 = vsub.s32 0, %v402
    %v404 = vrot.slane %v399, %v403
    %v422 = vunpack.c.l.b16 %v383
    %v423 = vunpack.c.l.b16 %v384
    %v424 = vunpack.c.l.b16 %v385
    %v425 = vunpack.c.l.b16 %v386
    %v426 = vunpack.c.l.b16 %v387
    %v427 = vunpack.c.l.b16 %v388
    %v428 = vunpack.c.l.b16 %v389
    %v429 = vunpack.c.l.b16 %v390
    %v430 = vunpack.c.l.b16 %v391
    %v431 = vunpack.c.l.b16 %v392
    %v432 = vunpack.c.l.b16 %v393
    %v433 = vunpack.c.l.b16 %v394
    %v434 = vunpack.c.l.b16 %v395
    %v435 = vunpack.c.l.b16 %v396
    %v436 = vunpack.c.l.b16 %v397
    %v437 = vunpack.c.l.b16 %v398
    %v438 = vpack.c.b16 %v423, %v422
    %v439 = vpack.c.b16 %v425, %v424
    %v440 = vpack.c.b16 %v427, %v426
    %v441 = vpack.c.b16 %v429, %v428
    %v442 = vpack.c.b16 %v431, %v430
    %v443 = vpack.c.b16 %v433, %v432
    %v444 = vpack.c.b16 %v435, %v434
    %v445 = vpack.c.b16 %v437, %v436
    %454 = vmatprep.subr.bf16.mxu0 0
    %455 = vmatpush1.bf16.msra.mxu0 %v438
    %456 = vmatprep.subr.bf16.mxu0 0
    %457 = vmatpush1.bf16.msra.mxu0 %v439
    %458 = vmatprep.subr.bf16.mxu0 0
    %459 = vmatpush1.bf16.msra.mxu0 %v440
    %460 = vmatprep.subr.bf16.mxu0 0
    %461 = vmatpush1.bf16.msra.mxu0 %v441
    %462 = vmatprep.subr.bf16.mxu0 0
    %463 = vmatpush1.bf16.msra.mxu0 %v442
    %464 = vmatprep.subr.bf16.mxu0 0
    %465 = vmatpush1.bf16.msra.mxu0 %v443
    %466 = vmatprep.subr.bf16.mxu0 0
    %467 = vmatpush1.bf16.msra.mxu0 %v444
    %468 = vmatprep.subr.bf16.mxu0 0
    %469 = vmatpush1.bf16.msra.mxu0 %v445
    %470 = vmatprep.subr.bf16.mxu0 0
    %471 = vmatpush1.bf16.msra.mxu0 0
    %472 = vmatprep.subr.bf16.mxu0 0
    %473 = vmatpush1.bf16.msra.mxu0 0
    %474 = vmatprep.subr.bf16.mxu0 0
    %475 = vmatpush1.bf16.msra.mxu0 0
    %476 = vmatprep.subr.bf16.mxu0 0
    %477 = vmatpush1.bf16.msra.mxu0 0
    %478 = vmatprep.subr.bf16.mxu0 0
    %479 = vmatpush1.bf16.msra.mxu0 0
    %480 = vmatprep.subr.bf16.mxu0 0
    %481 = vmatpush1.bf16.msra.mxu0 0
    %482 = vmatprep.subr.bf16.mxu0 0
    %483 = vmatpush1.bf16.msra.mxu0 0
    %484 = vmatprep.subr.bf16.mxu0 0
    %485 = vmatpush1.bf16.msra.mxu0 0
    %486 = vmatprep.mubr.bf16.mxu0 0
    %487 = vmatmul.mubr.bf16.gmra.mrb[0].mxu0 %v375
    %v488 = vpop.f32.mrb[0].mxu0
    %v489 = vadd.f32 %v404, %v488
    %v490 = vpop.f32.mrb[0].mxu0
    %v491 = vpop.f32.mrb[0].mxu0
    %v492 = vadd.f32 %v404, %v491
    %v493 = vpop.f32.mrb[0].mxu0
    %494 = vmatprep.mubr.bf16.mxu0 0
    %495 = vmatmul.mubr.bf16.gmra.mrb[0].mxu0 %v376
    %v496 = vpop.f32.mrb[0].mxu0
    %v497 = vadd.f32 %v404, %v496
    %v498 = vpop.f32.mrb[0].mxu0
    %v499 = vpop.f32.mrb[0].mxu0
    %v500 = vadd.f32 %v404, %v499
    %v501 = vpop.f32.mrb[0].mxu0
    %502 = vmatprep.mubr.bf16.mxu0 0
    %503 = vmatmul.mubr.bf16.gmra.mrb[0].mxu0 %v377
    %v504 = vpop.f32.mrb[0].mxu0
    %v505 = vadd.f32 %v404, %v504
    %v506 = vpop.f32.mrb[0].mxu0
    %v507 = vpop.f32.mrb[0].mxu0
    %v508 = vadd.f32 %v404, %v507
    %v509 = vpop.f32.mrb[0].mxu0
    %510 = vmatprep.mubr.bf16.mxu0 0
    %511 = vmatmul.mubr.bf16.gmra.mrb[0].mxu0 %v378
    %v512 = vpop.f32.mrb[0].mxu0
    %v513 = vadd.f32 %v404, %v512
    %v514 = vpop.f32.mrb[0].mxu0
    %v515 = vpop.f32.mrb[0].mxu0
    %v516 = vadd.f32 %v404, %v515
    %v517 = vpop.f32.mrb[0].mxu0
    %518 = vmatprep.mubr.bf16.mxu0 0
    %519 = vmatmul.mubr.bf16.gmra.mrb[0].mxu0 %v379
    %v520 = vpop.f32.mrb[0].mxu0
    %v521 = vadd.f32 %v404, %v520
    %v522 = vpop.f32.mrb[0].mxu0
    %v523 = vpop.f32.mrb[0].mxu0
    %v524 = vadd.f32 %v404, %v523
    %v525 = vpop.f32.mrb[0].mxu0
    %526 = vmatprep.mubr.bf16.mxu0 0
    %527 = vmatmul.mubr.bf16.gmra.mrb[0].mxu0 %v380
    %v528 = vpop.f32.mrb[0].mxu0
    %v529 = vadd.f32 %v404, %v528
    %v530 = vpop.f32.mrb[0].mxu0
    %v531 = vpop.f32.mrb[0].mxu0
    %v532 = vadd.f32 %v404, %v531
    %v533 = vpop.f32.mrb[0].mxu0
    %534 = vmatprep.mubr.bf16.mxu0 0
    %535 = vmatmul.mubr.bf16.gmra.mrb[0].mxu0 %v381
    %v536 = vpop.f32.mrb[0].mxu0
    %v537 = vadd.f32 %v404, %v536
    %v538 = vpop.f32.mrb[0].mxu0
    %v539 = vpop.f32.mrb[0].mxu0
    %v540 = vadd.f32 %v404, %v539
    %v541 = vpop.f32.mrb[0].mxu0
    %542 = vmatprep.mubr.bf16.mxu0 0
    %543 = vmatmul.mubr.bf16.gmra.mrb[0].mxu0 %v382
    %v544 = vpop.f32.mrb[0].mxu0
    %v545 = vadd.f32 %v404, %v544
    %v546 = vpop.f32.mrb[0].mxu0
    %v547 = vpop.f32.mrb[0].mxu0
    %v548 = vadd.f32 %v404, %v547
    %v549 = vpop.f32.mrb[0].mxu0
    %550 = vdwg.mxu0
    %551 = vst [vmem:[#allocation8] sm:$0xff] %v489
    %552 = vst [vmem:[#allocation8 + $0x8] sm:$0xff] %v492
    %553 = vst [vmem:[#allocation8 + $0x10] sm:$0xff] %v497
    %554 = vst [vmem:[#allocation8 + $0x18] sm:$0xff] %v500
    %555 = vst [vmem:[#allocation8 + $0x20] sm:$0xff] %v505
    %556 = vst [vmem:[#allocation8 + $0x28] sm:$0xff] %v508
    %557 = vst [vmem:[#allocation8 + $0x30] sm:$0xff] %v513
    %558 = vst [vmem:[#allocation8 + $0x38] sm:$0xff] %v516
    %559 = vst [vmem:[#allocation8 + $0x40] sm:$0xff] %v521
    %560 = vst [vmem:[#allocation8 + $0x48] sm:$0xff] %v524
    %561 = vst [vmem:[#allocation8 + $0x50] sm:$0xff] %v529
    %562 = vst [vmem:[#allocation8 + $0x58] sm:$0xff] %v532
    %563 = vst [vmem:[#allocation8 + $0x60] sm:$0xff] %v537
    %564 = vst [vmem:[#allocation8 + $0x68] sm:$0xff] %v540
    %565 = vst [vmem:[#allocation8 + $0x70] sm:$0xff] %v545
    %566 = vst [vmem:[#allocation8 + $0x78] sm:$0xff] %v548
    // Predicated region
    $region34: #{tpu_custom_call.1} parent=1 // pred_check
      _
    $region35: #{tpu_custom_call.1} parent=1 // pred_check_branch
      %568 = sbr.rel (0) target = $region37
    $region36: #{tpu_custom_call.1} parent=1 // pred_region
      %s570 = ssub.s32 2048, 2048
      %571 = vsyncadd [#allocation4], %s570
      %s572 = sshll.u32 [#allocation8], 4
      %s573 = int_to_ptr.vmem [resolvable:$true] %s572
      %578 = dma.vmem_to_hbm [thread:$0]  %s573, 2048, %s5, [#allocation4], 128, 128, 8
    $region37: #{tpu_custom_call.1} parent=1 // pred_fallthru
      _
    // Predicated region
    $region38: #{tpu_custom_call.1} parent=1 // pred_check
      _
    $region39: #{tpu_custom_call.1} parent=1 // pred_check_branch
      %580 = sbr.rel (0) target = $region41
    $region40: #{tpu_custom_call.1} parent=1 // pred_region
      %581 = dma.done [#allocation4], 2048
    $region41: #{tpu_custom_call.1} parent=1 // pred_fallthru
      _
    %582 = vsyncpa [#allocation3], 1
    %583 = vsyncpa [#allocation6], 1
    %584 = vsyncpa [#allocation4], 1

</llo_original>
